<compile_context>
chip_gen: v5e
topology: v5e:2x2
jax: 0.10.0
libtpu: 0.0.40
codegen_flags: <defaults>
</compile_context>

<pallas_src>
import functools

import jax
import jax.numpy as jnp
from jax.experimental import pallas as pl
from jax.experimental.pallas import tpu as pltpu


def _round_up(x, m):
    return ((x + m - 1) // m) * m


def _conv_bn_relu_kernel(x_ref, w_ref, shift_ref, o_ref, *scratch,
                         taps, out_len, lpad, bblk, fuse):
    """One batch block: O[b, c, p] = relu(sum_t W_t[c, :] @ X_t[b, :, p] + shift[c]).

    x_ref:     (BBLK, KKg, CIN, Lin)  bf16  flattened-spatial input (stride==1: KKg==1
                                            and taps are static lane offsets; stride>1:
                                            KKg==KH*KW pre-gathered taps, offset 0)
    w_ref:     (COUT, KK*CIN)         bf16  BN-folded weights, tap-major contraction dim
    shift_ref: (COUT, 1)              f32   folded BN shift
    o_ref:     (BBLK, COUT, LPAD)     f32   channel-major, lane-dense (128-mult) output
    scratch:   optional (KK*CIN, BBLK*LPAD) f32 VMEM im2col buffer (fused path only)
    """
    cout = o_ref.shape[1]
    cin = x_ref.shape[2]
    shift = shift_ref[...]                                     # (COUT, 1) f32

    if fuse:
        # Gather all taps once, then ONE MXU dot with K = KK*CIN.
        im2col = scratch[0]
        if out_len < lpad:
            im2col[...] = jnp.zeros_like(im2col)               # zero only-needed tails
        for b in range(bblk):
            base = b * lpad
            for t, (kk, off) in enumerate(taps):
                x_t = x_ref[b, kk, :, off:off + out_len]       # (CIN, out_len) bf16
                im2col[t * cin:(t + 1) * cin, base:base + out_len] = x_t.astype(jnp.float32)
        acc = jnp.dot(w_ref[...].astype(jnp.float32), im2col[...],
                      preferred_element_type=jnp.float32)      # (COUT, BBLK*LPAD) f32
        y = jnp.maximum(acc + shift, 0.0).astype(o_ref.dtype)  # strictly-f32 epilogue
        for b in range(bblk):
            o_ref[b] = y[:, b * lpad:(b + 1) * lpad]           # unmasked 128-mult store
    else:
        # Large-CIN fallback: each tap already fills the MXU contraction depth.
        for b in range(bblk):
            acc = jnp.zeros((cout, out_len), jnp.float32)
            for t, (kk, off) in enumerate(taps):
                x_t = x_ref[b, kk, :, off:off + out_len]       # (CIN, out_len) bf16
                w_t = w_ref[:, t * cin:(t + 1) * cin]          # (COUT, CIN)     bf16
                acc = acc + jnp.dot(w_t, x_t, preferred_element_type=jnp.float32)
            y = jnp.maximum(acc + shift, 0.0).astype(o_ref.dtype)
            o_ref[b, :, 0:out_len] = y


@functools.partial(
    jax.jit, static_argnames=("kernel_size", "stride", "padding", "dilation"))
def basic_conv2d(x_nchw, conv_weight, gamma, beta, running_mean, running_var,
                 kernel_size, stride=1, padding=0, dilation=1, eps=1e-5):
    """Forward of BasicConv2d. x_nchw: [N, Cin, H, W]; conv_weight: [Cout, Cin, K, K]."""
    n, cin, h, w = x_nchw.shape
    cout, cin_w, kh, kw = conv_weight.shape
    assert kh == kw == kernel_size and cin_w == cin
    k, s, p, d = kernel_size, stride, padding, dilation

    hp, wp = h + 2 * p, w + 2 * p
    oh = (hp - d * (k - 1) - 1) // s + 1
    ow = (wp - d * (k - 1) - 1) // s + 1
    assert oh > 0 and ow > 0, "degenerate output spatial extent"

    # Fold eval-mode BatchNorm: scale into the weights, shift stays as a bias.
    scale = gamma.astype(jnp.float32) / jnp.sqrt(running_var.astype(jnp.float32) + eps)
    shift = (beta.astype(jnp.float32) - running_mean.astype(jnp.float32) * scale)
    shift = shift.reshape(cout, 1)
    # [COUT,CIN,KH,KW]*scale -> [COUT,KH,KW,CIN] -> [COUT, KK*CIN]; contraction column
    # (kh*K + kw)*CIN + cin matches the im2col scratch row order and the taps order.
    w2 = (conv_weight.astype(jnp.float32) * scale[:, None, None, None])
    w2 = jnp.transpose(w2, (0, 2, 3, 1)).reshape(cout, k * k * cin).astype(jnp.bfloat16)

    # bf16 BEFORE the pad: halves the bytes of the one extra pad pass over the input.
    x_pad = jnp.pad(x_nchw.astype(jnp.bfloat16), ((0, 0), (0, 0), (p, p), (p, p)))

    if s == 1:
        # In-kernel tap extraction: each tap is a contiguous lane window of the
        # flattened padded spatial axis starting at kh*d*Wp + kw*d.  Invariant:
        # max(off) + out_len == Hp*Wp exactly (no OOB reads); the d*(k-1) wrap-around
        # lanes per output row are junk and are sliced off in the epilogue below.
        x_in = x_pad.reshape(n, 1, cin, hp * wp)
        taps = tuple((0, kh_ * d * wp + kw_ * d)
                     for kh_ in range(k) for kw_ in range(k))
        out_len = (oh - 1) * wp + ow
        lane_keep = oh * wp                      # lanes the wrapper reshape consumes
    else:
        # TODO(synk): stride>1 still pre-gathers taps in the wrapper (<= KK/s^2 input
        #             inflation); an in-kernel 2-D strided gather would remove it.
        slabs = [x_pad[:, :, kh_ * d: kh_ * d + s * (oh - 1) + 1: s,
                             kw_ * d: kw_ * d + s * (ow - 1) + 1: s]
                 for kh_ in range(k) for kw_ in range(k)]
        x_in = jnp.stack(slabs, axis=1).reshape(n, k * k, cin, oh * ow)
        taps = tuple((t, 0) for t in range(k * k))
        out_len = oh * ow
        lane_keep = oh * ow

    lpad = _round_up(lane_keep, 128)             # lane-dense, unmasked output stores

    # Batch blocking: several samples side by side on the lane axis per grid step to
    # amortize per-step overhead, while keeping >=2 grid steps whenever N >= 2 so both
    # v7x TensorCores get work (single-TC v5e/v6e are indifferent).
    bblk = 1
    while (n % (2 * bblk) == 0) and (bblk * lpad < 512) and (n // (2 * bblk) >= 2):
        bblk *= 2

    # One fused dot (K = KK*CIN) when CIN is small; per-tap dots once CIN alone
    # already fills the MXU contraction depth (keeps the scratch bounded too).
    fuse = (cin < 64) and (k * k * cin * bblk * lpad * 4 <= 8 * 1024 * 1024)

    kkg, lin = x_in.shape[1], x_in.shape[3]
    kernel = functools.partial(_conv_bn_relu_kernel, taps=taps, out_len=out_len,
                               lpad=lpad, bblk=bblk, fuse=fuse)
    scratch_shapes = ([pltpu.VMEM((k * k * cin, bblk * lpad), jnp.float32)]
                      if fuse else [])

    # VMEM budget from the actual (double-buffered) block bytes, not a fixed constant:
    # v7x has 64 MiB physical VMEM (32 MiB default scoped) vs 128 MiB on v5e/v6e.
    block_bytes = (2 * bblk * kkg * cin * lin * 2          # x blocks (bf16, 2 buffers)
                   + 2 * bblk * cout * lpad * 4            # out blocks (f32, 2 buffers)
                   + 2 * (cout * k * k * cin * 2 + cout * 4)
                   + (k * k * cin * bblk * lpad * 4 if fuse else 0))
    vmem_limit = int(min(64 * 1024 * 1024, max(8 * 1024 * 1024, 2 * block_bytes)))

    out = pl.pallas_call(
        kernel,
        out_shape=jax.ShapeDtypeStruct((n, cout, lpad), jnp.float32),
        grid=(n // bblk,),
        in_specs=[
            pl.BlockSpec((bblk, kkg, cin, lin), lambda i: (i, 0, 0, 0)),
            pl.BlockSpec((cout, k * k * cin), lambda i: (0, 0)),   # weights stay resident
            pl.BlockSpec((cout, 1), lambda i: (0, 0)),             # shift stays resident
        ],
        out_specs=pl.BlockSpec((bblk, cout, lpad), lambda i: (i, 0, 0)),
        scratch_shapes=scratch_shapes,
        compiler_params=pltpu.CompilerParams(
            dimension_semantics=("parallel",),   # batch-block axis -> 2 TCs on v7x
            vmem_limit_bytes=vmem_limit,
        ),
    )(x_in, w2, shift)

    # Lazy tail-lane slice instead of the old pad + reshape + slice epilogue.
    if s == 1:
        out = out[:, :, :oh * wp].reshape(n, cout, oh, wp)[:, :, :, :ow]
    else:
        out = out[:, :, :oh * ow].reshape(n, cout, oh, ow)
    return out                                   # NCHW f32, matches PyTorch output


def _reference(x, conv_w, gamma, beta, mean, var, stride, padding, dilation, eps=1e-5):
    """Pure-JAX reference mirroring the kernel's bf16 operand rounding (f32 accum)."""
    scale = gamma / jnp.sqrt(var + eps)
    shift = beta - mean * scale
    w_f = (conv_w * scale[:, None, None, None]).astype(jnp.bfloat16).astype(jnp.float32)
    x_f = x.astype(jnp.bfloat16).astype(jnp.float32)
    y = jax.lax.conv_general_dilated(
        x_f, w_f, window_strides=(stride, stride),
        padding=((padding, padding), (padding, padding)),
        rhs_dilation=(dilation, dilation),
        dimension_numbers=("NCHW", "OIHW", "NCHW"),
        precision=jax.lax.Precision.HIGHEST)
    return jnp.maximum(y + shift[None, :, None, None], 0.0)


if __name__ == "__main__":
    key = jax.random.PRNGKey(0)
    k_x, k_w, k_g, k_b, k_m, k_v, k_x2 = jax.random.split(key, 7)

    # BasicConv2d(in_planes=4, out_planes=8, kernel_size=3, stride=1, padding=1)
    N, CIN, H, W = 2, 4, 16, 16
    COUT, KSIZE = 8, 3

    x = jax.random.normal(k_x, (N, CIN, H, W), dtype=jnp.float32)
    conv_w = 0.1 * jax.random.normal(k_w, (COUT, CIN, KSIZE, KSIZE), dtype=jnp.float32)
    gamma = 1.0 + 0.1 * jax.random.normal(k_g, (COUT,), dtype=jnp.float32)
    beta = 0.1 * jax.random.normal(k_b, (COUT,), dtype=jnp.float32)
    running_mean = 0.05 * jax.random.normal(k_m, (COUT,), dtype=jnp.float32)
    running_var = 1.0 + 0.1 * jnp.abs(jax.random.normal(k_v, (COUT,), dtype=jnp.float32))

    # stride=1: fused single-dot path with in-kernel tap extraction (no HBM im2col).
    out1 = jax.block_until_ready(
        basic_conv2d(x, conv_w, gamma, beta, running_mean, running_var,
                     kernel_size=KSIZE, stride=1, padding=1, dilation=1))
    ref1 = _reference(x, conv_w, gamma, beta, running_mean, running_var, 1, 1, 1)
    assert out1.shape == (N, COUT, H, W), out1.shape
    assert jnp.allclose(out1, ref1, atol=2e-4, rtol=2e-4), \
        float(jnp.max(jnp.abs(out1 - ref1)))

    # stride=2: wrapper-gathered taps, identical fused kernel body.
    out2 = jax.block_until_ready(
        basic_conv2d(x, conv_w, gamma, beta, running_mean, running_var,
                     kernel_size=KSIZE, stride=2, padding=1, dilation=1))
    ref2 = _reference(x, conv_w, gamma, beta, running_mean, running_var, 2, 1, 1)
    assert out2.shape == (N, COUT, 8, 8), out2.shape
    assert jnp.allclose(out2, ref2, atol=2e-4, rtol=2e-4), \
        float(jnp.max(jnp.abs(out2 - ref2)))

    # larger batch / smaller spatial: exercises batch blocking (bblk > 1 per grid step).
    x8 = jax.random.normal(k_x2, (8, CIN, 8, 8), dtype=jnp.float32)
    out3 = jax.block_until_ready(
        basic_conv2d(x8, conv_w, gamma, beta, running_mean, running_var,
                     kernel_size=KSIZE, stride=1, padding=1, dilation=1))
    ref3 = _reference(x8, conv_w, gamma, beta, running_mean, running_var, 1, 1, 1)
    assert out3.shape == (8, COUT, 8, 8), out3.shape
    assert jnp.allclose(out3, ref3, atol=2e-4, rtol=2e-4), \
        float(jnp.max(jnp.abs(out3 - ref3)))

    print("KERNEL_OK")
</pallas_src>

<mosaic_0001>
module attributes {stable_mosaic.version = 11 : i64} {
  func.func @_conv_bn_relu_kernel(%arg0: i32, %arg1: memref<1x1x4x324xbf16, #tpu.memory_space<vmem>>, %arg2: memref<8x36xbf16, #tpu.memory_space<vmem>>, %arg3: memref<8x1xf32, #tpu.memory_space<vmem>>, %arg4: memref<1x8x384xf32, #tpu.memory_space<vmem>>, %arg5: memref<36x384xf32, #tpu.memory_space<vmem>>) attributes {dimension_semantics = [#tpu.dimension_semantics<parallel>], iteration_bounds = array<i64: 2>, scalar_prefetch = 0 : i64, scratch_operands = 1 : i64, tpu.core_type = #tpu.core_type<tc>, window_params = [{transform_indices = @transform_0, window_bounds = array<i64: 1, 1, 4, 324>}, {pipeline_mode = #tpu.pipeline_mode<synchronous>, transform_indices = @transform_1, window_bounds = array<i64: 8, 36>}, {pipeline_mode = #tpu.pipeline_mode<synchronous>, transform_indices = @transform_2, window_bounds = array<i64: 8, 1>}, {transform_indices = @transform_3, window_bounds = array<i64: 1, 8, 384>}]} {
    %c0 = arith.constant 0 : index
    %c0_0 = arith.constant 0 : index
    %0 = vector.load %arg3[%c0, %c0_0] : memref<8x1xf32, #tpu.memory_space<vmem>>, vector<8x1xf32>
    %cst = arith.constant 0.000000e+00 : f32
    %1 = vector.broadcast %cst : f32 to vector<36x384xf32>
    %c0_1 = arith.constant 0 : index
    %c0_2 = arith.constant 0 : index
    %2 = vector.load %arg5[%c0_1, %c0_2] : memref<36x384xf32, #tpu.memory_space<vmem>>, vector<36x384xf32>
    tpu.vector_store %arg5[%c0_1, %c0_2], %1 {strides = array<i32>} : memref<36x384xf32, #tpu.memory_space<vmem>>, vector<36x384xf32>,
    %c0_3 = arith.constant 0 : index
    %c0_4 = arith.constant 0 : index
    %c0_5 = arith.constant 0 : index
    %c0_6 = arith.constant 0 : index
    %3 = vector.load %arg1[%c0_3, %c0_4, %c0_5, %c0_6] : memref<1x1x4x324xbf16, #tpu.memory_space<vmem>>, vector<1x1x4x286xbf16>
    %4 = vector.shape_cast %3 : vector<1x1x4x286xbf16> to vector<4x286xbf16>
    %5 = arith.extf %4 : vector<4x286xbf16> to vector<4x286xf32>
    %c0_7 = arith.constant 0 : index
    %c0_8 = arith.constant 0 : index
    %6 = vector.load %arg5[%c0_7, %c0_8] : memref<36x384xf32, #tpu.memory_space<vmem>>, vector<4x286xf32>
    tpu.vector_store %arg5[%c0_7, %c0_8], %5 {strides = array<i32>} : memref<36x384xf32, #tpu.memory_space<vmem>>, vector<4x286xf32>,
    %c0_9 = arith.constant 0 : index
    %c0_10 = arith.constant 0 : index
    %c0_11 = arith.constant 0 : index
    %c1 = arith.constant 1 : index
    %7 = vector.load %arg1[%c0_9, %c0_10, %c0_11, %c1] : memref<1x1x4x324xbf16, #tpu.memory_space<vmem>>, vector<1x1x4x286xbf16>
    %8 = vector.shape_cast %7 : vector<1x1x4x286xbf16> to vector<4x286xbf16>
    %9 = arith.extf %8 : vector<4x286xbf16> to vector<4x286xf32>
    %c4 = arith.constant 4 : index
    %c0_12 = arith.constant 0 : index
    %10 = vector.load %arg5[%c4, %c0_12] : memref<36x384xf32, #tpu.memory_space<vmem>>, vector<4x286xf32>
    tpu.vector_store %arg5[%c4, %c0_12], %9 {strides = array<i32>} : memref<36x384xf32, #tpu.memory_space<vmem>>, vector<4x286xf32>,
    %c0_13 = arith.constant 0 : index
    %c0_14 = arith.constant 0 : index
    %c0_15 = arith.constant 0 : index
    %c2 = arith.constant 2 : index
    %11 = vector.load %arg1[%c0_13, %c0_14, %c0_15, %c2] : memref<1x1x4x324xbf16, #tpu.memory_space<vmem>>, vector<1x1x4x286xbf16>
    %12 = vector.shape_cast %11 : vector<1x1x4x286xbf16> to vector<4x286xbf16>
    %13 = arith.extf %12 : vector<4x286xbf16> to vector<4x286xf32>
    %c8 = arith.constant 8 : index
    %c0_16 = arith.constant 0 : index
    %14 = vector.load %arg5[%c8, %c0_16] : memref<36x384xf32, #tpu.memory_space<vmem>>, vector<4x286xf32>
    tpu.vector_store %arg5[%c8, %c0_16], %13 {strides = array<i32>} : memref<36x384xf32, #tpu.memory_space<vmem>>, vector<4x286xf32>,
    %c0_17 = arith.constant 0 : index
    %c0_18 = arith.constant 0 : index
    %c0_19 = arith.constant 0 : index
    %c18 = arith.constant 18 : index
    %15 = vector.load %arg1[%c0_17, %c0_18, %c0_19, %c18] : memref<1x1x4x324xbf16, #tpu.memory_space<vmem>>, vector<1x1x4x286xbf16>
    %16 = vector.shape_cast %15 : vector<1x1x4x286xbf16> to vector<4x286xbf16>
    %17 = arith.extf %16 : vector<4x286xbf16> to vector<4x286xf32>
    %c12 = arith.constant 12 : index
    %c0_20 = arith.constant 0 : index
    %18 = vector.load %arg5[%c12, %c0_20] : memref<36x384xf32, #tpu.memory_space<vmem>>, vector<4x286xf32>
    tpu.vector_store %arg5[%c12, %c0_20], %17 {strides = array<i32>} : memref<36x384xf32, #tpu.memory_space<vmem>>, vector<4x286xf32>,
    %c0_21 = arith.constant 0 : index
    %c0_22 = arith.constant 0 : index
    %c0_23 = arith.constant 0 : index
    %c19 = arith.constant 19 : index
    %19 = vector.load %arg1[%c0_21, %c0_22, %c0_23, %c19] : memref<1x1x4x324xbf16, #tpu.memory_space<vmem>>, vector<1x1x4x286xbf16>
    %20 = vector.shape_cast %19 : vector<1x1x4x286xbf16> to vector<4x286xbf16>
    %21 = arith.extf %20 : vector<4x286xbf16> to vector<4x286xf32>
    %c16 = arith.constant 16 : index
    %c0_24 = arith.constant 0 : index
    %22 = vector.load %arg5[%c16, %c0_24] : memref<36x384xf32, #tpu.memory_space<vmem>>, vector<4x286xf32>
    tpu.vector_store %arg5[%c16, %c0_24], %21 {strides = array<i32>} : memref<36x384xf32, #tpu.memory_space<vmem>>, vector<4x286xf32>,
    %c0_25 = arith.constant 0 : index
    %c0_26 = arith.constant 0 : index
    %c0_27 = arith.constant 0 : index
    %c20 = arith.constant 20 : index
    %23 = vector.load %arg1[%c0_25, %c0_26, %c0_27, %c20] : memref<1x1x4x324xbf16, #tpu.memory_space<vmem>>, vector<1x1x4x286xbf16>
    %24 = vector.shape_cast %23 : vector<1x1x4x286xbf16> to vector<4x286xbf16>
    %25 = arith.extf %24 : vector<4x286xbf16> to vector<4x286xf32>
    %c20_28 = arith.constant 20 : index
    %c0_29 = arith.constant 0 : index
    %26 = vector.load %arg5[%c20_28, %c0_29] : memref<36x384xf32, #tpu.memory_space<vmem>>, vector<4x286xf32>
    tpu.vector_store %arg5[%c20_28, %c0_29], %25 {strides = array<i32>} : memref<36x384xf32, #tpu.memory_space<vmem>>, vector<4x286xf32>,
    %c0_30 = arith.constant 0 : index
    %c0_31 = arith.constant 0 : index
    %c0_32 = arith.constant 0 : index
    %c36 = arith.constant 36 : index
    %27 = vector.load %arg1[%c0_30, %c0_31, %c0_32, %c36] : memref<1x1x4x324xbf16, #tpu.memory_space<vmem>>, vector<1x1x4x286xbf16>
    %28 = vector.shape_cast %27 : vector<1x1x4x286xbf16> to vector<4x286xbf16>
    %29 = arith.extf %28 : vector<4x286xbf16> to vector<4x286xf32>
    %c24 = arith.constant 24 : index
    %c0_33 = arith.constant 0 : index
    %30 = vector.load %arg5[%c24, %c0_33] : memref<36x384xf32, #tpu.memory_space<vmem>>, vector<4x286xf32>
    tpu.vector_store %arg5[%c24, %c0_33], %29 {strides = array<i32>} : memref<36x384xf32, #tpu.memory_space<vmem>>, vector<4x286xf32>,
    %c0_34 = arith.constant 0 : index
    %c0_35 = arith.constant 0 : index
    %c0_36 = arith.constant 0 : index
    %c37 = arith.constant 37 : index
    %31 = vector.load %arg1[%c0_34, %c0_35, %c0_36, %c37] : memref<1x1x4x324xbf16, #tpu.memory_space<vmem>>, vector<1x1x4x286xbf16>
    %32 = vector.shape_cast %31 : vector<1x1x4x286xbf16> to vector<4x286xbf16>
    %33 = arith.extf %32 : vector<4x286xbf16> to vector<4x286xf32>
    %c28 = arith.constant 28 : index
    %c0_37 = arith.constant 0 : index
    %34 = vector.load %arg5[%c28, %c0_37] : memref<36x384xf32, #tpu.memory_space<vmem>>, vector<4x286xf32>
    tpu.vector_store %arg5[%c28, %c0_37], %33 {strides = array<i32>} : memref<36x384xf32, #tpu.memory_space<vmem>>, vector<4x286xf32>,
    %c0_38 = arith.constant 0 : index
    %c0_39 = arith.constant 0 : index
    %c0_40 = arith.constant 0 : index
    %c38 = arith.constant 38 : index
    %35 = vector.load %arg1[%c0_38, %c0_39, %c0_40, %c38] : memref<1x1x4x324xbf16, #tpu.memory_space<vmem>>, vector<1x1x4x286xbf16>
    %36 = vector.shape_cast %35 : vector<1x1x4x286xbf16> to vector<4x286xbf16>
    %37 = arith.extf %36 : vector<4x286xbf16> to vector<4x286xf32>
    %c32 = arith.constant 32 : index
    %c0_41 = arith.constant 0 : index
    %38 = vector.load %arg5[%c32, %c0_41] : memref<36x384xf32, #tpu.memory_space<vmem>>, vector<4x286xf32>
    tpu.vector_store %arg5[%c32, %c0_41], %37 {strides = array<i32>} : memref<36x384xf32, #tpu.memory_space<vmem>>, vector<4x286xf32>,
    %c0_42 = arith.constant 0 : index
    %c0_43 = arith.constant 0 : index
    %39 = vector.load %arg2[%c0_42, %c0_43] : memref<8x36xbf16, #tpu.memory_space<vmem>>, vector<8x36xbf16>
    %40 = arith.extf %39 : vector<8x36xbf16> to vector<8x36xf32>
    %c0_44 = arith.constant 0 : index
    %c0_45 = arith.constant 0 : index
    %41 = vector.load %arg5[%c0_44, %c0_45] : memref<36x384xf32, #tpu.memory_space<vmem>>, vector<36x384xf32>
    %cst_46 = arith.constant dense<0.000000e+00> : vector<8x384xf32>
    %42 = tpu.matmul %40, %41, %cst_46 {dimension_numbers = #tpu.dot_dimension_numbers<[1], [0], [0], [1], [0, 0, 1, 1], [], []>} : vector<8x36xf32>, vector<36x384xf32>, vector<8x384xf32> -> vector<8x384xf32>
    %43 = vector.broadcast %0 : vector<8x1xf32> to vector<8x384xf32>
    %44 = arith.addf %42, %43 : vector<8x384xf32>
    %cst_47 = arith.constant 0.000000e+00 : f32
    %45 = vector.broadcast %cst_47 : f32 to vector<8x384xf32>
    %46 = arith.maximumf %44, %45 : vector<8x384xf32>
    %c0_48 = arith.constant 0 : index
    %c0_49 = arith.constant 0 : index
    %c0_50 = arith.constant 0 : index
    %47 = vector.load %arg4[%c0_48, %c0_49, %c0_50] : memref<1x8x384xf32, #tpu.memory_space<vmem>>, vector<1x8x384xf32>
    %48 = vector.shape_cast %47 : vector<1x8x384xf32> to vector<8x384xf32>
    %49 = vector.shape_cast %46 : vector<8x384xf32> to vector<1x8x384xf32>
    tpu.vector_store %arg4[%c0_48, %c0_49, %c0_50], %49 {strides = array<i32>} : memref<1x8x384xf32, #tpu.memory_space<vmem>>, vector<1x8x384xf32>,
    return
  }
  func.func @transform_0(%arg0: i32) -> (i32, i32, i32, i32) {
    %c0_i32 = arith.constant 0 : i32
    %c0_i32_0 = arith.constant 0 : i32
    %c0_i32_1 = arith.constant 0 : i32
    %c0_i32_2 = arith.constant 0 : i32
    return %arg0, %c0_i32, %c0_i32_0, %c0_i32_1 : i32, i32, i32, i32
  }
  func.func @transform_1(%arg0: i32) -> (i32, i32) {
    %c0_i32 = arith.constant 0 : i32
    %c0_i32_0 = arith.constant 0 : i32
    %c0_i32_1 = arith.constant 0 : i32
    return %c0_i32, %c0_i32_0 : i32, i32
  }
  func.func @transform_2(%arg0: i32) -> (i32, i32) {
    %c0_i32 = arith.constant 0 : i32
    %c0_i32_0 = arith.constant 0 : i32
    %c0_i32_1 = arith.constant 0 : i32
    return %c0_i32, %c0_i32_0 : i32, i32
  }
  func.func @transform_3(%arg0: i32) -> (i32, i32, i32) {
    %c0_i32 = arith.constant 0 : i32
    %c0_i32_0 = arith.constant 0 : i32
    %c0_i32_1 = arith.constant 0 : i32
    return %arg0, %c0_i32, %c0_i32_0 : i32, i32, i32
  }
}

</mosaic_0001>

<llo_original>
// kernel: basic_conv2d.1
$region0: #{basic_conv2d.1}
  #allocation0 [shape = 'u32[]', space=smem, size = 0x4, offset = 0x4, fixed_abs, tag = 'smem constant byte address 0x4 - core index']
  #allocation1 [shape = 'u32[72,128]{1,0:T(1,128)}', space=vmem, size = 0x9000, scoped, tag = 'internal scratch']
  #allocation2 [shape = 'f32[36,384]{1,0:T(8,128)}', space=vmem, size = 0xf000, scoped, tag = 'scratch operand']
  %s0 = inlined_call_operand.vmem [shape: bf16[2,1,4,324], index: 0, kind: input, shape index: {}]
  %s1 = inlined_call_operand.vmem [shape: bf16[8,36], index: 1, kind: input, shape index: {}]
  %s2 = inlined_call_operand.vmem [shape: f32[8,1], index: 2, kind: input, shape index: {}]
  %s3 = inlined_call_operand.vmem [shape: f32[2,8,384], index: 3, kind: output, shape index: {}]
  %s4 = sld [smem:[#allocation0]]
  $region45: #{basic_conv2d.1} parent=0
    _
  %s6 = ssub.s32 1, %s4
  %s7 = scalar_select 0, %s6, %s4
  loop: start=0, step=1, limit=4
  $region2: #{basic_conv2d.1} parent=0 // loop_pre_header
    _
  $region3: #{basic_conv2d.1} parent=0 // loop_header
    %s9 = sphi 0, %s13
    %p10 = scmp.ge.s32.totalorder %s9, 4
    %s19 = sphi 0, %s21
    %s22 = sphi 0, %s19
    %s23 = sphi 0, %s22
    %s39 = sphi 0, %s23
    %s43 = sphi 0, %s43
    %s45 = sphi 0, %s43
    %s46 = sphi 0, %s45
    %s60 = sphi 0, %s46
    %s64 = sphi 0, %s64
    %s66 = sphi 0, %s64
    %s67 = sphi 0, %s66
    %s81 = sphi 0, %s67
    %s87 = sphi 0, %s89
    %s90 = sphi 0, %s87
    %s91 = sphi 0, %s90
    %s107 = sphi 0, %s91
  $region4: #{basic_conv2d.1} parent=0 // loop_header_branch
    %12 = sbr.rel (%p10) target = $region8
  $region5: #{basic_conv2d.1} parent=0 // loop_body
    %s14 = ssub.s32 %s9, 1
    %s15 = ssub.s32 %s9, 2
    %s16 = sadd.s32 %s9, 1
    %s17 = ssub.s32 %s9, %s16
    %p18 = scmp.eq.s32.totalorder %s17, 0
    %s20 = sadd.s32 %s19, 1
    %s21 = scalar_select %p18, %s19, %s20
    %p24 = pneg %p18
    %p25 = scmp.eq.s32.totalorder %s9, 1
    %p26 = por %p24, %p25
    %p27 = scmp.ne.s32.totalorder %s19, %s22
    %p28 = scmp.eq.s32.totalorder %s9, 0
    %p29 = por %p27, %p28
    %p30 = scmp.ne.s32.totalorder %s19, %s22
    %p31 = scmp.eq.s32.totalorder %s14, 1
    %p32 = por %p30, %p31
    %p33 = scmp.ne.s32.totalorder %s22, %s23
    %p34 = scmp.eq.s32.totalorder %s14, 0
    %p35 = por %p33, %p34
    %p36 = scmp.ne.s32.totalorder %s22, %s23
    %p37 = scmp.eq.s32.totalorder %s15, 1
    %p38 = por %p36, %p37
    %p40 = scmp.ne.s32.totalorder %s23, %s39
    %p41 = scmp.eq.s32.totalorder %s15, 0
    %p42 = por %p40, %p41
    %s44 = sadd.s32 %s43, 1
    %p47 = scmp.eq.s32.totalorder %s9, 1
    %p48 = scmp.ne.s32.totalorder %s43, %s45
    %p49 = scmp.eq.s32.totalorder %s9, 0
    %p50 = por %p48, %p49
    %p51 = scmp.ne.s32.totalorder %s43, %s45
    %p52 = scmp.eq.s32.totalorder %s14, 1
    %p53 = por %p51, %p52
    %p54 = scmp.ne.s32.totalorder %s45, %s46
    %p55 = scmp.eq.s32.totalorder %s14, 0
    %p56 = por %p54, %p55
    %p57 = scmp.ne.s32.totalorder %s45, %s46
    %p58 = scmp.eq.s32.totalorder %s15, 1
    %p59 = por %p57, %p58
    %p61 = scmp.ne.s32.totalorder %s46, %s60
    %p62 = scmp.eq.s32.totalorder %s15, 0
    %p63 = por %p61, %p62
    %s65 = sadd.s32 %s64, 1
    %p68 = scmp.eq.s32.totalorder %s9, 1
    %p69 = scmp.ne.s32.totalorder %s64, %s66
    %p70 = scmp.eq.s32.totalorder %s9, 0
    %p71 = por %p69, %p70
    %p72 = scmp.ne.s32.totalorder %s64, %s66
    %p73 = scmp.eq.s32.totalorder %s14, 1
    %p74 = por %p72, %p73
    %p75 = scmp.ne.s32.totalorder %s66, %s67
    %p76 = scmp.eq.s32.totalorder %s14, 0
    %p77 = por %p75, %p76
    %p78 = scmp.ne.s32.totalorder %s66, %s67
    %p79 = scmp.eq.s32.totalorder %s15, 1
    %p80 = por %p78, %p79
    %p82 = scmp.ne.s32.totalorder %s67, %s81
    %p83 = scmp.eq.s32.totalorder %s15, 0
    %p84 = por %p82, %p83
    %s85 = ssub.s32 %s9, %s16
    %p86 = scmp.eq.s32.totalorder %s85, 0
    %s88 = sadd.s32 %s87, 1
    %s89 = scalar_select %p86, %s87, %s88
    %p92 = pneg %p86
    %p93 = scmp.eq.s32.totalorder %s9, 1
    %p94 = por %p92, %p93
    %p95 = scmp.ne.s32.totalorder %s87, %s90
    %p96 = scmp.eq.s32.totalorder %s9, 0
    %p97 = por %p95, %p96
    %p98 = scmp.ne.s32.totalorder %s87, %s90
    %p99 = scmp.eq.s32.totalorder %s14, 1
    %p100 = por %p98, %p99
    %p101 = scmp.ne.s32.totalorder %s90, %s91
    %p102 = scmp.eq.s32.totalorder %s14, 0
    %p103 = por %p101, %p102
    %p104 = scmp.ne.s32.totalorder %s90, %s91
    %p105 = scmp.eq.s32.totalorder %s15, 1
    %p106 = por %p104, %p105
    %p108 = scmp.ne.s32.totalorder %s91, %s107
    %p109 = scmp.eq.s32.totalorder %s15, 0
    %p110 = por %p108, %p109
    %p111 = scmp.le.s32.totalorder 1, %s9
    %p112 = scmp.lt.s32.totalorder %s9, 3
    %p113 = pnand %p111, %p112
    %p114 = pneg %p113
    // Predicated region
    $region9: #{basic_conv2d.1} parent=5 // pred_check
      _
    $region10: #{basic_conv2d.1} parent=5 // pred_check_branch
      %116 = sbr.rel (%p113) target = $region12
    $region11: #{basic_conv2d.1} parent=5 // pred_region
      %s117 = ssub.s32 %s9, 1
      // Predicated region
      $region13: #{basic_conv2d.1} parent=11 // pred_check
        %p118 = pneg %p56
      $region14: #{basic_conv2d.1} parent=11 // pred_check_branch
        %120 = sbr.rel (%p118) target = $region16
      $region15: #{basic_conv2d.1} parent=11 // pred_region
        _
      $region16: #{basic_conv2d.1} parent=11 // pred_fallthru
        _
      // Predicated region
      $region17: #{basic_conv2d.1} parent=11 // pred_check
        %p121 = pneg %p77
      $region18: #{basic_conv2d.1} parent=11 // pred_check_branch
        %123 = sbr.rel (%p121) target = $region20
      $region19: #{basic_conv2d.1} parent=11 // pred_region
        _
      $region20: #{basic_conv2d.1} parent=11 // pred_fallthru
        _
    $region12: #{basic_conv2d.1} parent=5 // pred_fallthru
      _
    %p124 = scmp.lt.s32.totalorder %s9, 2
    // Predicated region
    $region21: #{basic_conv2d.1} parent=5 // pred_check
      %p125 = pneg %p124
    $region22: #{basic_conv2d.1} parent=5 // pred_check_branch
      %127 = sbr.rel (%p125) target = $region24
    $region23: #{basic_conv2d.1} parent=5 // pred_region
      // Predicated region
      $region25: #{basic_conv2d.1} parent=23 // pred_check
        %p128 = pneg %p29
      $region26: #{basic_conv2d.1} parent=23 // pred_check_branch
        %130 = sbr.rel (%p128) target = $region28
      $region27: #{basic_conv2d.1} parent=23 // pred_region
        %p131 = scmp.lt.s32.totalorder %s9, 1
        %s132 = scalar_select %p131, %s9, 1
        %s133 = smul.addr %s132, 3
        %s134 = smul.addr %s133, 2
        %s135 = scalar_lea.vmem %s0, %s134
      $region28: #{basic_conv2d.1} parent=23 // pred_fallthru
        _
    $region24: #{basic_conv2d.1} parent=5 // pred_fallthru
      _
    %p136 = scmp.le.s32.totalorder 1, %s9
    %p137 = scmp.lt.s32.totalorder %s9, 3
    %p138 = pnand %p136, %p137
    %p139 = pneg %p138
    // Predicated region
    $region29: #{basic_conv2d.1} parent=5 // pred_check
      _
    $region30: #{basic_conv2d.1} parent=5 // pred_check_branch
      %141 = sbr.rel (%p138) target = $region32
    $region31: #{basic_conv2d.1} parent=5 // pred_region
      %s142 = ssub.s32 %s9, 1
      %p143 = scmp.lt.s32.totalorder %s14, 1
      %s144 = scalar_select %p143, %s14, 1
      %s145 = smul.addr %s144, 3
      %s146 = smul.addr %s145, 2
      %s147 = scalar_lea.vmem %s0, %s146
      %p148 = pneg %p35
      %p149 = pneg %p32
      %p150 = pneg %p56
      %p151 = pneg %p53
      %p152 = pneg %p77
      %p153 = pneg %p74
      %p154 = pneg %p103
      %p155 = pneg %p100
      %p156 = scmp.lt.s32.totalorder %s14, 1
      %s157 = scalar_select %p156, %s14, 1
      %s158 = smul.addr %s157, 3
      %s159 = smul.addr %s158, 8
      %s160 = scalar_lea.vmem %s3, %s159
      %p161 = scmp.lt.s32.totalorder %s14, 1
      %s162 = scalar_select %p161, %s14, 1
      %s163 = smul.addr %s162, 3
      %s164 = smul.addr %s163, 2
      %s165 = scalar_lea.vmem %s0, %s164
      %p166 = scmp.lt.s32.totalorder %s14, 1
      %s167 = scalar_select %p166, %s14, 1
      %s168 = smul.addr %s167, 3
      %s169 = smul.addr %s168, 8
      %s170 = scalar_lea.vmem %s3, %s169
      %v171 = vld [vmem:[%s2] sm:$0xff]
      %172 = vst [vmem:[#allocation2] sm:$0xff] 0.0
      %173 = vst [vmem:[#allocation2 + $0x8] sm:$0xff] 0.0
      %174 = vst [vmem:[#allocation2 + $0x10] sm:$0xff] 0.0
      %175 = vst [vmem:[#allocation2 + $0x18] sm:$0xff] 0.0
      %176 = vst [vmem:[#allocation2 + $0x20] sm:$0xff] 0.0
      %177 = vst [vmem:[#allocation2 + $0x28] sm:$0xff] 0.0
      %178 = vst [vmem:[#allocation2 + $0x30] sm:$0xff] 0.0
      %179 = vst [vmem:[#allocation2 + $0x38] sm:$0xff] 0.0
      %180 = vst [vmem:[#allocation2 + $0x40] sm:$0xff] 0.0
      %181 = vst [vmem:[#allocation2 + $0x48] sm:$0xff] 0.0
      %182 = vst [vmem:[#allocation2 + $0x50] sm:$0xff] 0.0
      %183 = vst [vmem:[#allocation2 + $0x58] sm:$0xff] 0.0
      %184 = vst [vmem:[#allocation2 + $0x60] sm:$0xf] 0.0
      %185 = vst [vmem:[#allocation2 + $0x68] sm:$0xf] 0.0
      %186 = vst [vmem:[#allocation2 + $0x70] sm:$0xf] 0.0
      %v187 = vld [vmem:[%s165] sm:$0x3f]
      %v188 = vunpack.c.l.bf16 %v187
      %v189 = vunpack.c.h.bf16 %v187
      %192 = vst [vmem:[#allocation1] ss:$2 sm:$0xff] %v188
      %s193 = scalar_lea.vmem [#allocation1], 16
      %194 = vst [vmem:[%s193] ss:$2 sm:$0xff] %v189
      %v195 = vld.sshfl [vmem:[#allocation1] sm:$0xff pattern:$0x75316420]
      %v196 = vld.sshfl [vmem:[#allocation1 + $0x8] sm:$0xff pattern:$0x75316420]
      %v197 = vld.sshfl [vmem:[#allocation1 + $0x10] sm:$0xff pattern:$0x75316420]
      %201 = vst [vmem:[#allocation2] sm:$0xf] %v195
      %202 = vst [vmem:[#allocation2 + $0x8] sm:$0xf] %v196
      %vm203 = vcmask 240640
      %204 = vst.msk [vmem:[#allocation2 + $0x10] sm:$0xf] %vm203, %v197
      %v205 = vld [vmem:[%s165] sm:$0x3f]
      %v206 = vunpack.c.l.bf16 %v205
      %v207 = vunpack.c.h.bf16 %v205
      %s210 = scalar_lea.vmem [#allocation1], 1
      %211 = vst [vmem:[%s210] ss:$2 sm:$0xff] %v206
      %s212 = scalar_lea.vmem [#allocation1], 17
      %213 = vst [vmem:[%s212] ss:$2 sm:$0xff] %v207
      %v214 = vld.sshfl [vmem:[#allocation1] sm:$0xff pattern:$0x75316420]
      %v215 = vld.sshfl [vmem:[#allocation1 + $0x8] sm:$0xff pattern:$0x75316420]
      %v216 = vld.sshfl [vmem:[#allocation1 + $0x10] sm:$0xff pattern:$0x75316420]
      %217 = vrot.lane.b32.xlu0 %v214, 127
      %v218 = vpop.permute.xlu0 %217
      %219 = vrot.lane.b32.xlu0 %v215, 127
      %v220 = vpop.permute.xlu0 %219
      %221 = vrot.lane.b32.xlu0 %v216, 127
      %v222 = vpop.permute.xlu0 %221
      %vm223 = vcmask 1039360
      %v224 = vsel %vm223, %v218, %v220
      %v225 = vsel %vm223, %v220, %v222
      %229 = vst [vmem:[#allocation2] sm:$0xf0] %v224
      %230 = vst [vmem:[#allocation2 + $0x8] sm:$0xf0] %v225
      %vm231 = vcmask 244740
      %232 = vst.msk [vmem:[#allocation2 + $0x10] sm:$0xf0] %vm231, %v222
      %v233 = vld [vmem:[%s165] sm:$0x3f]
      %v234 = vunpack.c.l.bf16 %v233
      %v235 = vunpack.c.h.bf16 %v233
      %238 = vst [vmem:[#allocation1] ss:$2 sm:$0xff] %v234
      %s239 = scalar_lea.vmem [#allocation1], 16
      %240 = vst [vmem:[%s239] ss:$2 sm:$0xff] %v235
      %v241 = vld.sshfl [vmem:[#allocation1] sm:$0xff pattern:$0x75316420]
      %v242 = vld.sshfl [vmem:[#allocation1 + $0x8] sm:$0xff pattern:$0x75316420]
      %v243 = vld.sshfl [vmem:[#allocation1 + $0x10] sm:$0xff pattern:$0x75316420]
      %244 = vrot.lane.b32.xlu0 %v241, 126
      %v245 = vpop.permute.xlu0 %244
      %246 = vrot.lane.b32.xlu0 %v242, 126
      %v247 = vpop.permute.xlu0 %246
      %248 = vrot.lane.b32.xlu0 %v243, 126
      %v249 = vpop.permute.xlu0 %248
      %vm250 = vcmask 1031168
      %v251 = vsel %vm250, %v245, %v247
      %v252 = vsel %vm250, %v247, %v249
      %256 = vst [vmem:[#allocation2 + $0x18] sm:$0xf] %v251
      %257 = vst [vmem:[#allocation2 + $0x20] sm:$0xf] %v252
      %258 = vst.msk [vmem:[#allocation2 + $0x28] sm:$0xf] %vm203, %v249
      %v259 = vld [vmem:[%s165] sm:$0x3f]
      %v260 = vunpack.c.l.bf16 %v259
      %v261 = vunpack.c.h.bf16 %v259
      %s264 = scalar_lea.vmem [#allocation1], 1
      %265 = vst [vmem:[%s264] ss:$2 sm:$0xff] %v260
      %s266 = scalar_lea.vmem [#allocation1], 17
      %267 = vst [vmem:[%s266] ss:$2 sm:$0xff] %v261
      %v268 = vld.sshfl [vmem:[#allocation1] sm:$0xff pattern:$0x75316420]
      %v269 = vld.sshfl [vmem:[#allocation1 + $0x8] sm:$0xff pattern:$0x75316420]
      %v270 = vld.sshfl [vmem:[#allocation1 + $0x10] sm:$0xff pattern:$0x75316420]
      %271 = vrot.lane.b32.xlu0 %v268, 110
      %v272 = vpop.permute.xlu0 %271
      %273 = vrot.lane.b32.xlu0 %v269, 110
      %v274 = vpop.permute.xlu0 %273
      %275 = vrot.lane.b32.xlu0 %v270, 110
      %v276 = vpop.permute.xlu0 %275
      %vm277 = vcmask 900096
      %v278 = vsel %vm277, %v272, %v274
      %v279 = vsel %vm277, %v274, %v276
      %283 = vst [vmem:[#allocation2 + $0x18] sm:$0xf0] %v278
      %284 = vst [vmem:[#allocation2 + $0x20] sm:$0xf0] %v279
      %285 = vst.msk [vmem:[#allocation2 + $0x28] sm:$0xf0] %vm231, %v276
      %v286 = vld [vmem:[%s165] sm:$0x3f]
      %v287 = vunpack.c.l.bf16 %v286
      %v288 = vunpack.c.h.bf16 %v286
      %291 = vst [vmem:[#allocation1] ss:$2 sm:$0xff] %v287
      %s292 = scalar_lea.vmem [#allocation1], 16
      %293 = vst [vmem:[%s292] ss:$2 sm:$0xff] %v288
      %v294 = vld.sshfl [vmem:[#allocation1] sm:$0xff pattern:$0x75316420]
      %v295 = vld.sshfl [vmem:[#allocation1 + $0x8] sm:$0xff pattern:$0x75316420]
      %v296 = vld.sshfl [vmem:[#allocation1 + $0x10] sm:$0xff pattern:$0x75316420]
      %297 = vrot.lane.b32.xlu0 %v294, 109
      %v298 = vpop.permute.xlu0 %297
      %299 = vrot.lane.b32.xlu0 %v295, 109
      %v300 = vpop.permute.xlu0 %299
      %301 = vrot.lane.b32.xlu0 %v296, 109
      %v302 = vpop.permute.xlu0 %301
      %vm303 = vcmask 891904
      %v304 = vsel %vm303, %v298, %v300
      %v305 = vsel %vm303, %v300, %v302
      %309 = vst [vmem:[#allocation2 + $0x30] sm:$0xf] %v304
      %310 = vst [vmem:[#allocation2 + $0x38] sm:$0xf] %v305
      %311 = vst.msk [vmem:[#allocation2 + $0x40] sm:$0xf] %vm203, %v302
      %v312 = vld [vmem:[%s165] sm:$0x3f]
      %v313 = vunpack.c.l.bf16 %v312
      %v314 = vunpack.c.h.bf16 %v312
      %s317 = scalar_lea.vmem [#allocation1], 1
      %318 = vst [vmem:[%s317] ss:$2 sm:$0xff] %v313
      %s319 = scalar_lea.vmem [#allocation1], 17
      %320 = vst [vmem:[%s319] ss:$2 sm:$0xff] %v314
      %v321 = vld.sshfl [vmem:[#allocation1] sm:$0xff pattern:$0x75316420]
      %v322 = vld.sshfl [vmem:[#allocation1 + $0x8] sm:$0xff pattern:$0x75316420]
      %v323 = vld.sshfl [vmem:[#allocation1 + $0x10] sm:$0xff pattern:$0x75316420]
      %324 = vrot.lane.b32.xlu0 %v321, 108
      %v325 = vpop.permute.xlu0 %324
      %326 = vrot.lane.b32.xlu0 %v322, 108
      %v327 = vpop.permute.xlu0 %326
      %328 = vrot.lane.b32.xlu0 %v323, 108
      %v329 = vpop.permute.xlu0 %328
      %vm330 = vcmask 883712
      %v331 = vsel %vm330, %v325, %v327
      %v332 = vsel %vm330, %v327, %v329
      %336 = vst [vmem:[#allocation2 + $0x30] sm:$0xf0] %v331
      %337 = vst [vmem:[#allocation2 + $0x38] sm:$0xf0] %v332
      %338 = vst.msk [vmem:[#allocation2 + $0x40] sm:$0xf0] %vm231, %v329
      %v339 = vld [vmem:[%s165] sm:$0x3f]
      %v340 = vunpack.c.l.bf16 %v339
      %v341 = vunpack.c.h.bf16 %v339
      %344 = vst [vmem:[#allocation1] ss:$2 sm:$0xff] %v340
      %s345 = scalar_lea.vmem [#allocation1], 16
      %346 = vst [vmem:[%s345] ss:$2 sm:$0xff] %v341
      %v347 = vld.sshfl [vmem:[#allocation1] sm:$0xff pattern:$0x75316420]
      %v348 = vld.sshfl [vmem:[#allocation1 + $0x8] sm:$0xff pattern:$0x75316420]
      %v349 = vld.sshfl [vmem:[#allocation1 + $0x10] sm:$0xff pattern:$0x75316420]
      %350 = vrot.lane.b32.xlu0 %v347, 92
      %v351 = vpop.permute.xlu0 %350
      %352 = vrot.lane.b32.xlu0 %v348, 92
      %v353 = vpop.permute.xlu0 %352
      %354 = vrot.lane.b32.xlu0 %v349, 92
      %v355 = vpop.permute.xlu0 %354
      %vm356 = vcmask 752640
      %v357 = vsel %vm356, %v351, %v353
      %v358 = vsel %vm356, %v353, %v355
      %362 = vst [vmem:[#allocation2 + $0x48] sm:$0xf] %v357
      %363 = vst [vmem:[#allocation2 + $0x50] sm:$0xf] %v358
      %364 = vst.msk [vmem:[#allocation2 + $0x58] sm:$0xf] %vm203, %v355
      %v365 = vld [vmem:[%s165] sm:$0x3f]
      %v366 = vunpack.c.l.bf16 %v365
      %v367 = vunpack.c.h.bf16 %v365
      %s370 = scalar_lea.vmem [#allocation1], 1
      %371 = vst [vmem:[%s370] ss:$2 sm:$0xff] %v366
      %s372 = scalar_lea.vmem [#allocation1], 17
      %373 = vst [vmem:[%s372] ss:$2 sm:$0xff] %v367
      %v374 = vld.sshfl [vmem:[#allocation1] sm:$0xff pattern:$0x75316420]
      %v375 = vld.sshfl [vmem:[#allocation1 + $0x8] sm:$0xff pattern:$0x75316420]
      %v376 = vld.sshfl [vmem:[#allocation1 + $0x10] sm:$0xff pattern:$0x75316420]
      %377 = vrot.lane.b32.xlu0 %v374, 91
      %v378 = vpop.permute.xlu0 %377
      %379 = vrot.lane.b32.xlu0 %v375, 91
      %v380 = vpop.permute.xlu0 %379
      %381 = vrot.lane.b32.xlu0 %v376, 91
      %v382 = vpop.permute.xlu0 %381
      %vm383 = vcmask 744448
      %v384 = vsel %vm383, %v378, %v380
      %v385 = vsel %vm383, %v380, %v382
      %389 = vst [vmem:[#allocation2 + $0x48] sm:$0xf0] %v384
      %390 = vst [vmem:[#allocation2 + $0x50] sm:$0xf0] %v385
      %391 = vst.msk [vmem:[#allocation2 + $0x58] sm:$0xf0] %vm231, %v382
      %v392 = vld [vmem:[%s165] sm:$0x3f]
      %v393 = vunpack.c.l.bf16 %v392
      %v394 = vunpack.c.h.bf16 %v392
      %397 = vst [vmem:[#allocation1] ss:$2 sm:$0xff] %v393
      %s398 = scalar_lea.vmem [#allocation1], 16
      %399 = vst [vmem:[%s398] ss:$2 sm:$0xff] %v394
      %v400 = vld.sshfl [vmem:[#allocation1] sm:$0xff pattern:$0x75316420]
      %v401 = vld.sshfl [vmem:[#allocation1 + $0x8] sm:$0xff pattern:$0x75316420]
      %v402 = vld.sshfl [vmem:[#allocation1 + $0x10] sm:$0xff pattern:$0x75316420]
      %403 = vrot.lane.b32.xlu0 %v400, 90
      %v404 = vpop.permute.xlu0 %403
      %405 = vrot.lane.b32.xlu0 %v401, 90
      %v406 = vpop.permute.xlu0 %405
      %407 = vrot.lane.b32.xlu0 %v402, 90
      %v408 = vpop.permute.xlu0 %407
      %vm409 = vcmask 736256
      %v410 = vsel %vm409, %v404, %v406
      %v411 = vsel %vm409, %v406, %v408
      %415 = vst [vmem:[#allocation2 + $0x60] sm:$0xf] %v410
      %416 = vst [vmem:[#allocation2 + $0x68] sm:$0xf] %v411
      %417 = vst.msk [vmem:[#allocation2 + $0x70] sm:$0xf] %vm203, %v408
      %v418 = vld [vmem:[%s1] sm:$0xf]
      %v419 = vunpack.c.l.bf16 %v418
      %v420 = vld [vmem:[#allocation2] sm:$0xff]
      %v421 = vld [vmem:[#allocation2 + $0x8] sm:$0xff]
      %v422 = vld [vmem:[#allocation2 + $0x10] sm:$0xff]
      %v423 = vld [vmem:[#allocation2 + $0x18] sm:$0xff]
      %v424 = vld [vmem:[#allocation2 + $0x20] sm:$0xff]
      %v425 = vld [vmem:[#allocation2 + $0x28] sm:$0xff]
      %v426 = vld [vmem:[#allocation2 + $0x30] sm:$0xff]
      %v427 = vld [vmem:[#allocation2 + $0x38] sm:$0xff]
      %v428 = vld [vmem:[#allocation2 + $0x40] sm:$0xff]
      %v429 = vld [vmem:[#allocation2 + $0x48] sm:$0xff]
      %v430 = vld [vmem:[#allocation2 + $0x50] sm:$0xff]
      %v431 = vld [vmem:[#allocation2 + $0x58] sm:$0xff]
      %v432 = vld [vmem:[#allocation2 + $0x60] sm:$0xf]
      %v433 = vld [vmem:[#allocation2 + $0x68] sm:$0xf]
      %v434 = vld [vmem:[#allocation2 + $0x70] sm:$0xf]
      %436 = vset.pattern.permute.xlu0 0
      %437 = vperm.xlu0 %436, %v171
      %v438 = vpop.permute.xlu0 %437
      %vm440 = vcmask 293888
      %v442 = vsel %vm440, %v419, 0
      %vm444 = vcmask 1043456
      %v446 = vsel %vm444, %v432, 0
      %v449 = vsel %vm444, %v433, 0
      %v452 = vsel %vm444, %v434, 0
      %454 = vmatpush.msra.mxu0 0.0
      %455 = vmatpush.msra.mxu0 0.0
      %456 = vmatpush.msra.mxu0 0.0
      %457 = vmatpush.msra.mxu0 0.0
      %458 = vmatpush.msra.mxu0 0.0
      %459 = vmatpush.msra.mxu0 0.0
      %460 = vmatpush.msra.mxu0 0.0
      %461 = vmatpush.msra.mxu0 0.0
      %462 = vmatpush.msra.mxu0 0.0
      %463 = vmatpush.msra.mxu0 0.0
      %464 = vmatpush.msra.mxu0 0.0
      %465 = vmatpush.msra.mxu0 %v446
      %466 = vmatpush.msra.mxu0 %v429
      %467 = vmatpush.msra.mxu0 %v426
      %468 = vmatpush.msra.mxu0 %v423
      %469 = vmatpush.msra.mxu0 %v420
      %470 = vmatmul.f32.gmra.mxu0 %v442
      %v471 = vpop.f32.mrf.mxu0
      %v472 = vadd.f32 %v438, %v471
      %473 = vdwg.mxu0
      %474 = vmatpush.msra.mxu0 0.0
      %475 = vmatpush.msra.mxu0 0.0
      %476 = vmatpush.msra.mxu0 0.0
      %477 = vmatpush.msra.mxu0 0.0
      %478 = vmatpush.msra.mxu0 0.0
      %479 = vmatpush.msra.mxu0 0.0
      %480 = vmatpush.msra.mxu0 0.0
      %481 = vmatpush.msra.mxu0 0.0
      %482 = vmatpush.msra.mxu0 0.0
      %483 = vmatpush.msra.mxu0 0.0
      %484 = vmatpush.msra.mxu0 0.0
      %485 = vmatpush.msra.mxu0 %v449
      %486 = vmatpush.msra.mxu0 %v430
      %487 = vmatpush.msra.mxu0 %v427
      %488 = vmatpush.msra.mxu0 %v424
      %489 = vmatpush.msra.mxu0 %v421
      %490 = vmatmul.f32.gmra.mxu0 %v442
      %v491 = vpop.f32.mrf.mxu0
      %v492 = vadd.f32 %v438, %v491
      %493 = vdwg.mxu0
      %494 = vmatpush.msra.mxu0 0.0
      %495 = vmatpush.msra.mxu0 0.0
      %496 = vmatpush.msra.mxu0 0.0
      %497 = vmatpush.msra.mxu0 0.0
      %498 = vmatpush.msra.mxu0 0.0
      %499 = vmatpush.msra.mxu0 0.0
      %500 = vmatpush.msra.mxu0 0.0
      %501 = vmatpush.msra.mxu0 0.0
      %502 = vmatpush.msra.mxu0 0.0
      %503 = vmatpush.msra.mxu0 0.0
      %504 = vmatpush.msra.mxu0 0.0
      %505 = vmatpush.msra.mxu0 %v452
      %506 = vmatpush.msra.mxu0 %v431
      %507 = vmatpush.msra.mxu0 %v428
      %508 = vmatpush.msra.mxu0 %v425
      %509 = vmatpush.msra.mxu0 %v422
      %510 = vmatmul.f32.gmra.mxu0 %v442
      %v511 = vpop.f32.mrf.mxu0
      %v512 = vadd.f32 %v438, %v511
      %513 = vdwg.mxu0
      %v514 = vmax.f32 %v472, 0.0
      %v515 = vmax.f32 %v492, 0.0
      %v516 = vmax.f32 %v512, 0.0
      %517 = vst [vmem:[%s170] sm:$0xff] %v514
      %518 = vst [vmem:[%s170 + $0x8] sm:$0xff] %v515
      %519 = vst [vmem:[%s170 + $0x10] sm:$0xff] %v516
      %p520 = scmp.lt.s32.totalorder %s14, 1
      %s521 = scalar_select %p520, %s14, 1
      %s522 = smul.addr %s521, 3
      %s523 = smul.addr %s522, 8
      %s524 = scalar_lea.vmem %s3, %s523
      // Predicated region
      $region33: #{basic_conv2d.1} parent=31 // pred_check
        %p525 = pneg %p100
      $region34: #{basic_conv2d.1} parent=31 // pred_check_branch
        %527 = sbr.rel (%p525) target = $region36
      $region35: #{basic_conv2d.1} parent=31 // pred_region
        _
      $region36: #{basic_conv2d.1} parent=31 // pred_fallthru
        _
    $region32: #{basic_conv2d.1} parent=5 // pred_fallthru
      _
    %p528 = scmp.le.s32.totalorder 2, %s9
    // Predicated region
    $region37: #{basic_conv2d.1} parent=5 // pred_check
      %p529 = pneg %p528
    $region38: #{basic_conv2d.1} parent=5 // pred_check_branch
      %531 = sbr.rel (%p529) target = $region40
    $region39: #{basic_conv2d.1} parent=5 // pred_region
      %s532 = ssub.s32 %s9, 2
      // Predicated region
      $region41: #{basic_conv2d.1} parent=39 // pred_check
        %p533 = pneg %p106
      $region42: #{basic_conv2d.1} parent=39 // pred_check_branch
        %535 = sbr.rel (%p533) target = $region44
      $region43: #{basic_conv2d.1} parent=39 // pred_region
        %p536 = scmp.lt.s32.totalorder %s15, 1
        %s537 = scalar_select %p536, %s15, 1
        %s538 = smul.addr %s537, 3
        %s539 = smul.addr %s538, 8
        %s540 = scalar_lea.vmem %s3, %s539
      $region44: #{basic_conv2d.1} parent=39 // pred_fallthru
        _
    $region40: #{basic_conv2d.1} parent=5 // pred_fallthru
      _
  $region6: #{basic_conv2d.1} parent=0 // loop_footer
    %s13 = sadd.s32 1, %s9
  $region7: #{basic_conv2d.1} parent=0 // loop_footer_branch
    %8 = sbr.rel target = $region3
  $region8: #{basic_conv2d.1} parent=0 // loop_exit
    _

</llo_original>
